<compile_context>
chip_gen: v6e
topology: v6e:2x2x1
jax: 0.10.0
libtpu: 0.0.40
codegen_flags: <defaults>
</compile_context>

<pallas_src>
import functools

import jax
import jax.numpy as jnp
from jax.experimental import pallas as pl
from jax.experimental.pallas import tpu as pltpu


def _friction_halfread_kernel(scale_ref, z_tail_ref, o_ref, *, half):
    """Reads only the second half of each row. Requires half % 128 == 0."""
    tile_b = o_ref.shape[0]
    o_ref[:, :half] = jnp.zeros((tile_b, half), o_ref.dtype)
    scaled = z_tail_ref[...] * scale_ref[0]          # scale = -f_const (f32 in SMEM)
    o_ref[:, half:] = scaled.astype(o_ref.dtype)


def _friction_masked_kernel(scale_row_ref, z_ref, o_ref):
    """General path: one vmul per vreg against a hoisted per-column scale row."""
    o_ref[...] = (z_ref[...] * scale_row_ref[...]).astype(o_ref.dtype)


def _pick_tile_b(bs, row_bytes, budget_bytes=2 * 1024 * 1024):
    """Largest (8-multiple) batch tile dividing bs within a per-buffer VMEM budget."""
    cap = max(8, budget_bytes // max(row_bytes, 1))
    for cand in (512, 256, 128, 64, 32, 16, 8):
        if cand <= cap and bs % cand == 0:
            return cand
    return bs  # full extent (always a legal block shape)


def friction_dynamics(t, z, f_const):
    """Pallas equivalent of FrictionDynamics.forward(t, z). `t` is unused."""
    del t
    bs, D = z.shape
    half = D // 2
    itemsize = jnp.dtype(z.dtype).itemsize
    tile_b = _pick_tile_b(bs, D * itemsize)
    grid = (bs // tile_b,)

    out_shape = jax.ShapeDtypeStruct((bs, D), z.dtype)
    out_spec = pl.BlockSpec((tile_b, D), lambda i: (i, 0))
    cparams = pltpu.CompilerParams(dimension_semantics=("parallel",))

    if D % 2 == 0 and half % 128 == 0:
        # Lane-aligned half: DMA only the second half of z per tile (1.5N traffic).
        scale = jnp.asarray(-f_const, jnp.float32).reshape(1)
        kernel = functools.partial(_friction_halfread_kernel, half=half)
        return pl.pallas_call(
            kernel,
            out_shape=out_shape,
            grid=grid,
            in_specs=[
                pl.BlockSpec(memory_space=pltpu.MemorySpace.SMEM),   # scale scalar
                pl.BlockSpec((tile_b, half), lambda i: (i, 1)),      # second half only
            ],
            out_specs=out_spec,
            compiler_params=cparams,
        )(scale, z)

    # General / small-D path: multiply by a precomputed per-column scale row
    # (0 for first half, -f_const for second half). Hoisted outside the kernel.
    col = jnp.arange(D, dtype=jnp.int32)
    scale_row = jnp.where(
        col >= half, jnp.asarray(-f_const, z.dtype), jnp.asarray(0, z.dtype)
    ).astype(z.dtype)[None, :]                                       # (1, D)
    return pl.pallas_call(
        _friction_masked_kernel,
        out_shape=out_shape,
        grid=grid,
        in_specs=[
            pl.BlockSpec((1, D), lambda i: (0, 0)),                  # scale row (resident)
            pl.BlockSpec((tile_b, D), lambda i: (i, 0)),             # z tile
        ],
        out_specs=out_spec,
        compiler_params=cparams,
    )(scale_row, z)


def _reference(z, f_const):
    half = z.shape[1] // 2
    return jnp.zeros_like(z).at[:, half:].set(-f_const * z[:, half:])


if __name__ == "__main__":
    key = jax.random.PRNGKey(0)
    f_const = 0.5
    t = jnp.zeros((), dtype=jnp.float32)  # unused, matches PyTorch signature

    # Case 1: original small shape (general path, full-array block).
    bs, D = 2, 32
    z1 = jax.random.normal(key, (bs, D), dtype=jnp.float32)
    out1 = jax.block_until_ready(friction_dynamics(t, z1, f_const))
    assert out1.shape == (bs, D) and out1.dtype == z1.dtype
    assert jnp.allclose(out1, _reference(z1, f_const)), "mismatch (masked path)"

    # Case 2: lane-aligned half (half-read path, batch-tiled grid).
    bs2, D2 = 16, 256
    z2 = jax.random.normal(jax.random.PRNGKey(1), (bs2, D2), dtype=jnp.float32)
    out2 = jax.block_until_ready(friction_dynamics(t, z2, f_const))
    assert out2.shape == (bs2, D2) and out2.dtype == z2.dtype
    assert jnp.allclose(out2, _reference(z2, f_const)), "mismatch (half-read path)"

    print("KERNEL_OK")
</pallas_src>

<mosaic_0001>
module attributes {stable_mosaic.version = 11 : i64} {
  func.func @_friction_masked_kernel(%arg0: i32, %arg1: memref<1x32xf32, #tpu.memory_space<vmem>>, %arg2: memref<2x32xf32, #tpu.memory_space<vmem>>, %arg3: memref<2x32xf32, #tpu.memory_space<vmem>>) attributes {dimension_semantics = [#tpu.dimension_semantics<parallel>], iteration_bounds = array<i64: 1>, scalar_prefetch = 0 : i64, scratch_operands = 0 : i64, tpu.core_type = #tpu.core_type<tc>, window_params = [{pipeline_mode = #tpu.pipeline_mode<synchronous>, transform_indices = @transform_0, window_bounds = array<i64: 1, 32>}, {transform_indices = @transform_1, window_bounds = array<i64: 2, 32>}, {transform_indices = @transform_2, window_bounds = array<i64: 2, 32>}]} {
    %c0 = arith.constant 0 : index
    %c0_0 = arith.constant 0 : index
    %0 = vector.load %arg2[%c0, %c0_0] : memref<2x32xf32, #tpu.memory_space<vmem>>, vector<2x32xf32>
    %c0_1 = arith.constant 0 : index
    %c0_2 = arith.constant 0 : index
    %1 = vector.load %arg1[%c0_1, %c0_2] : memref<1x32xf32, #tpu.memory_space<vmem>>, vector<1x32xf32>
    %2 = vector.broadcast %1 : vector<1x32xf32> to vector<2x32xf32>
    %3 = arith.mulf %0, %2 : vector<2x32xf32>
    %c0_3 = arith.constant 0 : index
    %c0_4 = arith.constant 0 : index
    %4 = vector.load %arg3[%c0_3, %c0_4] : memref<2x32xf32, #tpu.memory_space<vmem>>, vector<2x32xf32>
    tpu.vector_store %arg3[%c0_3, %c0_4], %3 {strides = array<i32>} : memref<2x32xf32, #tpu.memory_space<vmem>>, vector<2x32xf32>,
    return
  }
  func.func @transform_0(%arg0: i32) -> (i32, i32) {
    %c0_i32 = arith.constant 0 : i32
    %c0_i32_0 = arith.constant 0 : i32
    %c0_i32_1 = arith.constant 0 : i32
    return %c0_i32, %c0_i32_0 : i32, i32
  }
  func.func @transform_1(%arg0: i32) -> (i32, i32) {
    %c0_i32 = arith.constant 0 : i32
    %c0_i32_0 = arith.constant 0 : i32
    return %arg0, %c0_i32 : i32, i32
  }
  func.func @transform_2(%arg0: i32) -> (i32, i32) {
    %c0_i32 = arith.constant 0 : i32
    %c0_i32_0 = arith.constant 0 : i32
    return %arg0, %c0_i32 : i32, i32
  }
}

</mosaic_0001>

<llo_original>
// kernel: tpu_custom_call.1
$region0: #{tpu_custom_call.1}
  #allocation0 [shape = 'u32[]', space=smem, size = 0x4, offset = 0x4, fixed_abs, tag = 'smem constant byte address 0x4 - core index']
  #allocation1 [shape = 'u32[144,128]{1,0:T(1,128)}', space=vmem, size = 0x12000, scoped, tag = 'internal scratch']
  %s0 = inlined_call_operand.hbm [shape: f32[1,32], index: 0, kind: input, shape index: {}]
  %s1 = inlined_call_operand.hbm [shape: f32[2,32], index: 1, kind: input, shape index: {}]
  %s2 = inlined_call_operand.hbm [shape: f32[2,32], index: 2, kind: output, shape index: {}]
  %s3 = sld [smem:[#allocation0]]
  $region26: #{tpu_custom_call.1} parent=0
    _
  %s5 = ssub.s32 1, %s3
  %s6 = scalar_select 0, %s5, %s3
  $region1: #{tpu_custom_call.1} parent=0
    #allocation2 [shape = 'u8[512]{0}', space=vmem, size = 0x400, scoped, tag = 'input window, operand 0, single buffered']
    #allocation3 [shape = 's32[1]{0}', space=sflag, size = 0x4, scoped, tag = 'scoped memory for tpu_custom_call.1']
    #allocation4 [shape = 's32[1]{0}', space=sflag, size = 0x4, scoped, tag = 'scoped memory for tpu_custom_call.1']
    #allocation5 [shape = 'u8[1024]{0}', space=vmem, size = 0x400, scoped, tag = 'input window, operand 1, single buffered']
    #allocation6 [shape = 's32[1]{0}', space=sflag, size = 0x4, scoped, tag = 'scoped memory for tpu_custom_call.1']
    #allocation7 [shape = 'u8[1024]{0}', space=vmem, size = 0x400, scoped, tag = 'output window, operand 0, single buffered']
    %7 = vsyncpa [#allocation3], 0
    %8 = vsyncpa [#allocation6], 0
    %9 = vsyncpa [#allocation4], 0
    // Predicated region
    $region2: #{tpu_custom_call.1} parent=1 // pred_check
      _
    $region3: #{tpu_custom_call.1} parent=1 // pred_check_branch
      %11 = sbr.rel (0) target = $region5
    $region4: #{tpu_custom_call.1} parent=1 // pred_region
      %s13 = ssub.s32 16, 16
      %14 = vsyncadd [#allocation3], %s13
      %s16 = sshll.u32 [#allocation2], 4
      %s17 = int_to_ptr.vmem [resolvable:$true] %s16
      %19 = dma.hbm_to_vmem [thread:$0]  %s0, 16, %s17, [#allocation3]
    $region5: #{tpu_custom_call.1} parent=1 // pred_fallthru
      _
    // Predicated region
    $region6: #{tpu_custom_call.1} parent=1 // pred_check
      _
    $region7: #{tpu_custom_call.1} parent=1 // pred_check_branch
      %21 = sbr.rel (0) target = $region9
    $region8: #{tpu_custom_call.1} parent=1 // pred_region
      %s23 = ssub.s32 32, 32
      %24 = vsyncadd [#allocation6], %s23
      %s26 = sshll.u32 [#allocation5], 4
      %s27 = int_to_ptr.vmem [resolvable:$true] %s26
      %29 = dma.hbm_to_vmem [thread:$0]  %s1, 32, %s27, [#allocation6]
    $region9: #{tpu_custom_call.1} parent=1 // pred_fallthru
      _
    // Predicated region
    $region10: #{tpu_custom_call.1} parent=1 // pred_check
      _
    $region11: #{tpu_custom_call.1} parent=1 // pred_check_branch
      %31 = sbr.rel (0) target = $region13
    $region12: #{tpu_custom_call.1} parent=1 // pred_region
      %32 = dma.done [#allocation3], 16
    $region13: #{tpu_custom_call.1} parent=1 // pred_fallthru
      _
    // Predicated region
    $region14: #{tpu_custom_call.1} parent=1 // pred_check
      _
    $region15: #{tpu_custom_call.1} parent=1 // pred_check_branch
      %34 = sbr.rel (0) target = $region17
    $region16: #{tpu_custom_call.1} parent=1 // pred_region
      %35 = dma.done [#allocation6], 32
    $region17: #{tpu_custom_call.1} parent=1 // pred_fallthru
      _
    %v36 = vld [vmem:[#allocation5] sm:$0x3]
    %v37 = vld [vmem:[#allocation2] sm:$0x1]
    %v39 = vlaneseq
    %v40 = vshrl.u32 %v39, 7
    %v41 = vsub.s32 0, %v40
    %v42 = vrot.slane %v37, %v41
    %v44 = vmul.f32 %v36, %v42
    %vm45 = vcmask 254976
    %46 = vst.msk [vmem:[#allocation7] sm:$0x3] %vm45, %v44
    // Predicated region
    $region18: #{tpu_custom_call.1} parent=1 // pred_check
      _
    $region19: #{tpu_custom_call.1} parent=1 // pred_check_branch
      %48 = sbr.rel (0) target = $region21
    $region20: #{tpu_custom_call.1} parent=1 // pred_region
      %s50 = ssub.s32 32, 32
      %51 = vsyncadd [#allocation4], %s50
      %s53 = sshll.u32 [#allocation7], 4
      %s54 = int_to_ptr.vmem [resolvable:$true] %s53
      %56 = dma.vmem_to_hbm [thread:$0]  %s54, 32, %s2, [#allocation4]
    $region21: #{tpu_custom_call.1} parent=1 // pred_fallthru
      _
    // Predicated region
    $region22: #{tpu_custom_call.1} parent=1 // pred_check
      _
    $region23: #{tpu_custom_call.1} parent=1 // pred_check_branch
      %58 = sbr.rel (0) target = $region25
    $region24: #{tpu_custom_call.1} parent=1 // pred_region
      %59 = dma.done [#allocation4], 32
    $region25: #{tpu_custom_call.1} parent=1 // pred_fallthru
      _
    %60 = vsyncpa [#allocation3], 1
    %61 = vsyncpa [#allocation6], 1
    %62 = vsyncpa [#allocation4], 1

</llo_original>
